<compile_context>
chip_gen: v7x
topology: tpu7x:2x2x1
jax: 0.10.0
libtpu: 0.0.40
codegen_flags: <defaults>
</compile_context>

<pallas_src>
import functools

import jax
import jax.numpy as jnp
from jax.experimental import pallas as pl
from jax.experimental.pallas import tpu as pltpu


def _round_up(x, m):
    return ((x + m - 1) // m) * m


def _sd_embedding_kernel(tok_ids_ref, feat_ids_ref, flag_ref, table_ref,
                         out_ref, *, v_tok):
    d, tn = out_ref.shape
    v_total = table_ref.shape[1]

    tok_ids = tok_ids_ref[...]      # [1, tn] int32
    feat_ids = feat_ids_ref[...]    # [1, tn] int32

    # Fused one-hot gather (transposed): two hot rows per column,
    # row == tok_id and row == v_tok + feat_id.  Single iota/compare pass.
    row = jax.lax.broadcasted_iota(jnp.int32, (v_total, tn), 0)
    onehot = ((row == tok_ids) | (row == feat_ids + v_tok)).astype(jnp.float32)

    # [d, V_total] @ [V_total, tn] -> [d, tn]; bias is pre-folded into the
    # token rows of table_ref, so this single dot is the whole projection.
    proj = jnp.dot(table_ref[...], onehot, preferred_element_type=jnp.float32)

    # Blend the flag into the last feature row (VALU select, no concat/XLU).
    feat_row = jax.lax.broadcasted_iota(jnp.int32, (d, tn), 0)
    out_ref[...] = jnp.where(feat_row == d - 1, flag_ref[...], proj)


def _run_sd_embedding(tok_ids, feat_ids, flag, table_t, v_tok):
    """tok_ids/feat_ids: [1, N] int32, flag: [1, N] f32, table_t: [d, V_total].

    Returns the lane-dense transposed result [d, N] f32.
    """
    n = tok_ids.shape[1]
    d = table_t.shape[0]

    # Tile along the lane (N) axis.  Multi-step tiles must be a multiple of
    # 128; a single-step grid may use the full (unpadded) extent.
    if n <= 128:
        tile_n, n_pad = n, n
    else:
        if n >= 2048 and _round_up(n, 256) == _round_up(n, 128):
            tile_n = 256           # bigger tile only when it adds no padding
        else:
            tile_n = 128           # >= 2 grid steps; bounded tail waste
        n_pad = _round_up(n, tile_n)

    if n_pad != n:
        pad = n_pad - n
        # Padded columns get id 0 / flag 0; they are sliced off below.
        tok_ids = jnp.pad(tok_ids, ((0, 0), (0, pad)))
        feat_ids = jnp.pad(feat_ids, ((0, 0), (0, pad)))
        flag = jnp.pad(flag, ((0, 0), (0, pad)))

    out = pl.pallas_call(
        functools.partial(_sd_embedding_kernel, v_tok=v_tok),
        out_shape=jax.ShapeDtypeStruct((d, n_pad), jnp.float32),
        grid_spec=pltpu.PrefetchScalarGridSpec(
            num_scalar_prefetch=0,
            grid=(n_pad // tile_n,),
            in_specs=[
                pl.BlockSpec((1, tile_n), lambda i: (0, i)),    # tok ids
                pl.BlockSpec((1, tile_n), lambda i: (0, i)),    # feat ids
                pl.BlockSpec((1, tile_n), lambda i: (0, i)),    # flag
                pl.BlockSpec(table_t.shape, lambda i: (0, 0)),  # fused table
            ],
            out_specs=pl.BlockSpec((d, tile_n), lambda i: (0, i)),
        ),
        compiler_params=pltpu.CompilerParams(
            dimension_semantics=("parallel",)),
    )(tok_ids, feat_ids, flag, table_t)

    return out[:, :n] if n_pad != n else out


class SDEmbeddingPallas:
    """JAX/Pallas port of SDEmbedding (forward only, both branches)."""

    def __init__(self, src_vocab_size, tgt_vocab_size, d_embed, key):
        ks = jax.random.split(key, 8)
        std = d_embed ** (-0.5)
        # Embedding tables: N(0, d^-0.5), as in the PyTorch Embedding() helper.
        self.token_src_embed = std * jax.random.normal(
            ks[0], (src_vocab_size, d_embed), jnp.float32)
        self.token_tgt_embed = std * jax.random.normal(
            ks[1], (tgt_vocab_size, d_embed), jnp.float32)
        self.weighted_factor_embed = std * jax.random.normal(
            ks[2], (tgt_vocab_size, d_embed), jnp.float32)
        self.structural_chord_embed = std * jax.random.normal(
            ks[3], (tgt_vocab_size, d_embed), jnp.float32)

        # feature_proj: Linear(d_embed, 25); PyTorch default U(-1/sqrt(fan_in),.)
        lim_f = 1.0 / (d_embed ** 0.5)
        self.wf = jax.random.uniform(ks[4], (d_embed, 25), jnp.float32,
                                     -lim_f, lim_f)           # = weight.T
        self.bf = jax.random.uniform(ks[5], (1, 25), jnp.float32,
                                     -lim_f, lim_f)

        # concate_proj: Linear(d_embed + 25, d_embed - 1)
        lim_c = 1.0 / ((d_embed + 25) ** 0.5)
        wc = jax.random.uniform(ks[6], (d_embed + 25, d_embed - 1), jnp.float32,
                                -lim_c, lim_c)                # = weight.T
        self.wct = wc[:d_embed, :]                            # [d, d-1]
        self.wcf = wc[d_embed:, :]                            # [25, d-1]
        self.bc = jax.random.uniform(ks[7], (1, d_embed - 1), jnp.float32,
                                     -lim_c, lim_c)
        self.d_embed = d_embed

        # ---- offline fold of the two Linear layers (and bias) into one ----
        # proj = tok_tab[tok] @ Wct + ((feat_tab[feat] @ Wf + bf) @ Wcf) + bc
        #      = (A_tok + bias_fold)[tok] + A_feat[feat]
        bias_fold = self.bf @ self.wcf + self.bc              # [1, d-1]
        a_tok_src = self.token_src_embed @ self.wct + bias_fold
        a_tok_tgt = self.token_tgt_embed @ self.wct + bias_fold
        a_feat_src = (self.weighted_factor_embed @ self.wf) @ self.wcf
        a_feat_tgt = (self.structural_chord_embed @ self.wf) @ self.wcf

        def fuse_transpose(a_tok, a_feat):
            a_all = jnp.concatenate([a_tok, a_feat], axis=0)   # [V_tot, d-1]
            a_all = jnp.pad(a_all, ((0, 0), (0, 1)))           # flag column
            return jnp.asarray(a_all.T)                        # [d, V_tot]

        self.table_src_t = fuse_transpose(a_tok_src, a_feat_src)
        self.table_tgt_t = fuse_transpose(a_tok_tgt, a_feat_tgt)
        self.v_tok_src = src_vocab_size
        self.v_tok_tgt = tgt_vocab_size

    def __call__(self, inputs):
        token = inputs['token']                               # [B, S] int32
        b, s = token.shape
        n = b * s
        d = self.d_embed

        if 'weighted_factor' in inputs:
            table_t, v_tok = self.table_src_t, self.v_tok_src
            feature = inputs['weighted_factor']               # [B, S] int32
            flag = inputs['weighted_notes']                   # [B, S, 1] f32
        else:
            table_t, v_tok = self.table_tgt_t, self.v_tok_tgt
            feature = inputs['structural_chord']
            flag = inputs['is_cadence']

        tok_flat = token.reshape(1, n).astype(jnp.int32)
        feat_flat = feature.reshape(1, n).astype(jnp.int32)
        flag_flat = flag.reshape(1, n).astype(jnp.float32)

        out_t = _run_sd_embedding(tok_flat, feat_flat, flag_flat,
                                  table_t, v_tok)             # [d, n]
        return out_t.T.reshape(b, s, d)

    # Pure-JAX reference (mirrors the PyTorch forward, unfused) for validation.
    def reference(self, inputs):
        token = inputs['token']
        if 'weighted_factor' in inputs:
            tok_emb = self.token_src_embed[token]
            feat_emb = self.weighted_factor_embed[inputs['weighted_factor']]
            flag = inputs['weighted_notes']
        else:
            tok_emb = self.token_tgt_embed[token]
            feat_emb = self.structural_chord_embed[inputs['structural_chord']]
            flag = inputs['is_cadence']
        h = feat_emb @ self.wf + self.bf[0]
        concat = jnp.concatenate([tok_emb, h], axis=-1)
        wc = jnp.concatenate([self.wct, self.wcf], axis=0)
        proj = concat @ wc + self.bc[0]
        return jnp.concatenate([proj, flag.astype(jnp.float32)], axis=-1)


if __name__ == "__main__":
    key = jax.random.PRNGKey(0)
    (k_model, k_tok, k_feat, k_flag,
     k_tok2, k_feat2, k_flag2, k_tok3, k_feat3, k_flag3) = jax.random.split(key, 10)

    B, S, D = 2, 8, 32
    SRC_V, TGT_V = 50, 40

    model = SDEmbeddingPallas(SRC_V, TGT_V, D, k_model)

    # src branch inputs (small: single-step grid, no padding)
    src_inputs = {
        'token': jax.random.randint(k_tok, (B, S), 0, SRC_V, jnp.int32),
        'weighted_factor': jax.random.randint(k_feat, (B, S), 0, TGT_V, jnp.int32),
        'weighted_notes': jax.random.uniform(k_flag, (B, S, 1), jnp.float32),
    }
    # tgt branch inputs
    tgt_inputs = {
        'token': jax.random.randint(k_tok2, (B, S), 0, TGT_V, jnp.int32),
        'structural_chord': jax.random.randint(k_feat2, (B, S), 0, TGT_V, jnp.int32),
        'is_cadence': jax.random.uniform(k_flag2, (B, S, 1), jnp.float32),
    }
    # larger src inputs (exercises the multi-step tiled path + tail padding)
    B2, S2 = 3, 50
    big_inputs = {
        'token': jax.random.randint(k_tok3, (B2, S2), 0, SRC_V, jnp.int32),
        'weighted_factor': jax.random.randint(k_feat3, (B2, S2), 0, TGT_V, jnp.int32),
        'weighted_notes': jax.random.uniform(k_flag3, (B2, S2, 1), jnp.float32),
    }

    out_src = jax.block_until_ready(model(src_inputs))
    out_tgt = jax.block_until_ready(model(tgt_inputs))
    out_big = jax.block_until_ready(model(big_inputs))

    ref_src = model.reference(src_inputs)
    ref_tgt = model.reference(tgt_inputs)
    ref_big = model.reference(big_inputs)

    assert out_src.shape == (B, S, D) and out_tgt.shape == (B, S, D)
    assert out_big.shape == (B2, S2, D)
    assert jnp.allclose(out_src, ref_src, atol=1e-5, rtol=1e-5)
    assert jnp.allclose(out_tgt, ref_tgt, atol=1e-5, rtol=1e-5)
    assert jnp.allclose(out_big, ref_big, atol=1e-5, rtol=1e-5)

    print("KERNEL_OK")
</pallas_src>

<mosaic_0001>
module attributes {stable_mosaic.version = 11 : i64} {
  func.func @_sd_embedding_kernel(%arg0: i32, %arg1: memref<1x16xi32, #tpu.memory_space<vmem>>, %arg2: memref<1x16xi32, #tpu.memory_space<vmem>>, %arg3: memref<1x16xf32, #tpu.memory_space<vmem>>, %arg4: memref<32x90xf32, #tpu.memory_space<vmem>>, %arg5: memref<32x16xf32, #tpu.memory_space<vmem>>) attributes {dimension_semantics = [#tpu.dimension_semantics<parallel>], iteration_bounds = array<i64: 1>, scalar_prefetch = 0 : i64, scratch_operands = 0 : i64, tpu.core_type = #tpu.core_type<tc>, window_params = [{transform_indices = @transform_0, window_bounds = array<i64: 1, 16>}, {transform_indices = @transform_1, window_bounds = array<i64: 1, 16>}, {transform_indices = @transform_2, window_bounds = array<i64: 1, 16>}, {pipeline_mode = #tpu.pipeline_mode<synchronous>, transform_indices = @transform_3, window_bounds = array<i64: 32, 90>}, {transform_indices = @transform_4, window_bounds = array<i64: 32, 16>}]} {
    %c0 = arith.constant 0 : index
    %c0_0 = arith.constant 0 : index
    %0 = vector.load %arg1[%c0, %c0_0] : memref<1x16xi32, #tpu.memory_space<vmem>>, vector<1x16xi32>
    %c0_1 = arith.constant 0 : index
    %c0_2 = arith.constant 0 : index
    %1 = vector.load %arg2[%c0_1, %c0_2] : memref<1x16xi32, #tpu.memory_space<vmem>>, vector<1x16xi32>
    %2 = tpu.iota {dimensions = array<i32: 0>} : vector<90x16xi32>
    %3 = vector.broadcast %0 : vector<1x16xi32> to vector<90x16xi32>
    %4 = arith.cmpi eq, %2, %3 : vector<90x16xi32>
    %c50_i32 = arith.constant 50 : i32
    %5 = vector.broadcast %c50_i32 : i32 to vector<1x16xi32>
    %6 = arith.addi %1, %5 : vector<1x16xi32>
    %7 = vector.broadcast %6 : vector<1x16xi32> to vector<90x16xi32>
    %8 = arith.cmpi eq, %2, %7 : vector<90x16xi32>
    %9 = arith.ori %4, %8 : vector<90x16xi1>
    %10 = arith.extui %9 : vector<90x16xi1> to vector<90x16xi32>
    %11 = arith.sitofp %10 : vector<90x16xi32> to vector<90x16xf32>
    %c0_3 = arith.constant 0 : index
    %c0_4 = arith.constant 0 : index
    %12 = vector.load %arg4[%c0_3, %c0_4] : memref<32x90xf32, #tpu.memory_space<vmem>>, vector<32x90xf32>
    %cst = arith.constant dense<0.000000e+00> : vector<32x16xf32>
    %13 = tpu.matmul %12, %11, %cst {dimension_numbers = #tpu.dot_dimension_numbers<[1], [0], [0], [1], [0, 0, 1, 1], [], []>} : vector<32x90xf32>, vector<90x16xf32>, vector<32x16xf32> -> vector<32x16xf32>
    %14 = tpu.iota {dimensions = array<i32: 0>} : vector<32x16xi32>
    %c31_i32 = arith.constant 31 : i32
    %15 = vector.broadcast %c31_i32 : i32 to vector<32x16xi32>
    %16 = arith.cmpi eq, %14, %15 : vector<32x16xi32>
    %c0_5 = arith.constant 0 : index
    %c0_6 = arith.constant 0 : index
    %17 = vector.load %arg3[%c0_5, %c0_6] : memref<1x16xf32, #tpu.memory_space<vmem>>, vector<1x16xf32>
    %18 = vector.shape_cast %17 : vector<1x16xf32> to vector<1x16xf32>
    %19 = vector.broadcast %18 : vector<1x16xf32> to vector<32x16xf32>
    %20 = arith.select %16, %19, %13 : vector<32x16xi1>, vector<32x16xf32>
    %c0_7 = arith.constant 0 : index
    %c0_8 = arith.constant 0 : index
    %21 = vector.load %arg5[%c0_7, %c0_8] : memref<32x16xf32, #tpu.memory_space<vmem>>, vector<32x16xf32>
    tpu.vector_store %arg5[%c0_7, %c0_8], %20 {strides = array<i32>} : memref<32x16xf32, #tpu.memory_space<vmem>>, vector<32x16xf32>,
    return
  }
  func.func @transform_0(%arg0: i32) -> (i32, i32) {
    %c0_i32 = arith.constant 0 : i32
    %c0_i32_0 = arith.constant 0 : i32
    return %c0_i32, %arg0 : i32, i32
  }
  func.func @transform_1(%arg0: i32) -> (i32, i32) {
    %c0_i32 = arith.constant 0 : i32
    %c0_i32_0 = arith.constant 0 : i32
    return %c0_i32, %arg0 : i32, i32
  }
  func.func @transform_2(%arg0: i32) -> (i32, i32) {
    %c0_i32 = arith.constant 0 : i32
    %c0_i32_0 = arith.constant 0 : i32
    return %c0_i32, %arg0 : i32, i32
  }
  func.func @transform_3(%arg0: i32) -> (i32, i32) {
    %c0_i32 = arith.constant 0 : i32
    %c0_i32_0 = arith.constant 0 : i32
    %c0_i32_1 = arith.constant 0 : i32
    return %c0_i32, %c0_i32_0 : i32, i32
  }
  func.func @transform_4(%arg0: i32) -> (i32, i32) {
    %c0_i32 = arith.constant 0 : i32
    %c0_i32_0 = arith.constant 0 : i32
    return %c0_i32, %arg0 : i32, i32
  }
}

</mosaic_0001>

<llo_original>
// kernel: tpu_custom_call.1
$region0: #{tpu_custom_call.1}
  #allocation0 [shape = 'u32[]', space=smem, size = 0x4, offset = 0x4, fixed_abs, tag = 'smem constant byte address 0x4 - core index']
  #allocation1 [shape = 'u32[144,128]{1,0:T(1,128)}', space=vmem, size = 0x12000, scoped, tag = 'internal scratch']
  %s0 = inlined_call_operand.hbm [shape: s32[1,16], index: 0, kind: input, shape index: {}]
  %s1 = inlined_call_operand.vmem [shape: s32[1,16], index: 1, kind: input, shape index: {}]
  %s2 = inlined_call_operand.vmem [shape: f32[1,16], index: 2, kind: input, shape index: {}]
  %s3 = inlined_call_operand.hbm [shape: f32[32,90], index: 3, kind: input, shape index: {}]
  %s4 = inlined_call_operand.vmem [shape: f32[32,16], index: 4, kind: output, shape index: {}]
  %s5 = sld [smem:[#allocation0]]
  $region34: #{tpu_custom_call.1} parent=0
    _
  %s7 = ssub.s32 1, %s5
  %s8 = scalar_select 0, %s7, %s5
  $region1: #{tpu_custom_call.1} parent=0
    #allocation2 [shape = 'u8[512]{0}', space=vmem, size = 0x400, scoped, tag = 'input window, operand 0, single buffered']
    #allocation3 [shape = 's32[1]{0}', space=sflag, size = 0x4, scoped, tag = 'scoped memory for tpu_custom_call.1']
    #allocation4 [shape = 'u8[16384]{0}', space=vmem, size = 0x4000, scoped, tag = 'input window, operand 3, single buffered']
    #allocation5 [shape = 's32[1]{0}', space=sflag, size = 0x4, scoped, tag = 'scoped memory for tpu_custom_call.1']
    %9 = vsyncpa [#allocation3], 0
    %10 = vsyncpa [#allocation5], 0
    // Predicated region
    $region2: #{tpu_custom_call.1} parent=1 // pred_check
      _
    $region3: #{tpu_custom_call.1} parent=1 // pred_check_branch
      %12 = sbr.rel (0) target = $region5
    $region4: #{tpu_custom_call.1} parent=1 // pred_region
      %s14 = ssub.s32 16, 16
      %15 = vsyncadd [#allocation3], %s14
      %s17 = sshll.u32 [#allocation2], 4
      %s18 = int_to_ptr.vmem [resolvable:$true] %s17
      %20 = dma.hbm_to_vmem [thread:$0]  %s0, 16, %s18, [#allocation3]
    $region5: #{tpu_custom_call.1} parent=1 // pred_fallthru
      _
    // Predicated region
    $region6: #{tpu_custom_call.1} parent=1 // pred_check
      _
    $region7: #{tpu_custom_call.1} parent=1 // pred_check_branch
      %22 = sbr.rel (0) target = $region9
    $region8: #{tpu_custom_call.1} parent=1 // pred_region
      _
    $region9: #{tpu_custom_call.1} parent=1 // pred_fallthru
      _
    // Predicated region
    $region10: #{tpu_custom_call.1} parent=1 // pred_check
      _
    $region11: #{tpu_custom_call.1} parent=1 // pred_check_branch
      %24 = sbr.rel (0) target = $region13
    $region12: #{tpu_custom_call.1} parent=1 // pred_region
      _
    $region13: #{tpu_custom_call.1} parent=1 // pred_fallthru
      _
    // Predicated region
    $region14: #{tpu_custom_call.1} parent=1 // pred_check
      _
    $region15: #{tpu_custom_call.1} parent=1 // pred_check_branch
      %26 = sbr.rel (0) target = $region17
    $region16: #{tpu_custom_call.1} parent=1 // pred_region
      %s28 = ssub.s32 512, 512
      %29 = vsyncadd [#allocation5], %s28
      %s30 = sshll.u32 [#allocation4], 4
      %s31 = int_to_ptr.vmem [resolvable:$true] %s30
      %36 = dma.hbm_to_vmem [thread:$0]  %s3, 512, %s31, [#allocation5], 128, 128, 8
    $region17: #{tpu_custom_call.1} parent=1 // pred_fallthru
      _
    // Predicated region
    $region18: #{tpu_custom_call.1} parent=1 // pred_check
      _
    $region19: #{tpu_custom_call.1} parent=1 // pred_check_branch
      %38 = sbr.rel (0) target = $region21
    $region20: #{tpu_custom_call.1} parent=1 // pred_region
      %39 = dma.done [#allocation3], 16
    $region21: #{tpu_custom_call.1} parent=1 // pred_fallthru
      _
    // Predicated region
    $region22: #{tpu_custom_call.1} parent=1 // pred_check
      _
    $region23: #{tpu_custom_call.1} parent=1 // pred_check_branch
      %41 = sbr.rel (0) target = $region25
    $region24: #{tpu_custom_call.1} parent=1 // pred_region
      %42 = dma.done [#allocation5], 512
    $region25: #{tpu_custom_call.1} parent=1 // pred_fallthru
      _
    %v43 = vld [vmem:[#allocation2] sm:$0x1]
    %v44 = vld [vmem:[%s1] sm:$0x1]
    %v45 = vlaneseq
    %v46 = vshrl.u32 %v45, 7
    %v47 = vadd.s32 %v46, 8
    %v48 = vadd.s32 %v46, 16
    %v49 = vadd.s32 %v46, 24
    %v50 = vadd.s32 %v46, 32
    %v51 = vadd.s32 %v46, 40
    %v52 = vadd.s32 %v46, 48
    %v53 = vadd.s32 %v46, 56
    %v54 = vadd.s32 %v46, 64
    %v55 = vadd.s32 %v46, 72
    %v56 = vadd.s32 %v46, 80
    %v57 = vadd.s32 %v46, 88
    %v58 = vlaneseq
    %v59 = vshrl.u32 %v58, 7
    %v60 = vsub.s32 0, %v59
    %v61 = vrot.slane %v43, %v60
    %vm62 = vcmp.eq.s32.totalorder %v46, %v61
    %vm63 = vcmp.eq.s32.totalorder %v47, %v61
    %vm64 = vcmp.eq.s32.totalorder %v48, %v61
    %vm65 = vcmp.eq.s32.totalorder %v49, %v61
    %vm66 = vcmp.eq.s32.totalorder %v50, %v61
    %vm67 = vcmp.eq.s32.totalorder %v51, %v61
    %vm68 = vcmp.eq.s32.totalorder %v52, %v61
    %vm69 = vcmp.eq.s32.totalorder %v53, %v61
    %vm70 = vcmp.eq.s32.totalorder %v54, %v61
    %vm71 = vcmp.eq.s32.totalorder %v55, %v61
    %vm72 = vcmp.eq.s32.totalorder %v56, %v61
    %vm73 = vcmp.eq.s32.totalorder %v57, %v61
    %v74 = vadd.s32 %v44, 50
    %v75 = vlaneseq
    %v76 = vshrl.u32 %v75, 7
    %v77 = vsub.s32 0, %v76
    %v78 = vrot.slane %v74, %v77
    %vm79 = vcmp.eq.s32.totalorder %v46, %v78
    %vm80 = vcmp.eq.s32.totalorder %v47, %v78
    %vm81 = vcmp.eq.s32.totalorder %v48, %v78
    %vm82 = vcmp.eq.s32.totalorder %v49, %v78
    %vm83 = vcmp.eq.s32.totalorder %v50, %v78
    %vm84 = vcmp.eq.s32.totalorder %v51, %v78
    %vm85 = vcmp.eq.s32.totalorder %v52, %v78
    %vm86 = vcmp.eq.s32.totalorder %v53, %v78
    %vm87 = vcmp.eq.s32.totalorder %v54, %v78
    %vm88 = vcmp.eq.s32.totalorder %v55, %v78
    %vm89 = vcmp.eq.s32.totalorder %v56, %v78
    %vm90 = vcmp.eq.s32.totalorder %v57, %v78
    %vm91 = vmor %vm62, %vm79
    %vm92 = vmor %vm63, %vm80
    %vm93 = vmor %vm64, %vm81
    %vm94 = vmor %vm65, %vm82
    %vm95 = vmor %vm66, %vm83
    %vm96 = vmor %vm67, %vm84
    %vm97 = vmor %vm68, %vm85
    %vm98 = vmor %vm69, %vm86
    %vm99 = vmor %vm70, %vm87
    %vm100 = vmor %vm71, %vm88
    %vm101 = vmor %vm72, %vm89
    %vm102 = vmor %vm73, %vm90
    %v103 = vsel %vm91, 1, 0
    %v104 = vsel %vm92, 1, 0
    %v105 = vsel %vm93, 1, 0
    %v106 = vsel %vm94, 1, 0
    %v107 = vsel %vm95, 1, 0
    %v108 = vsel %vm96, 1, 0
    %v109 = vsel %vm97, 1, 0
    %v110 = vsel %vm98, 1, 0
    %v111 = vsel %vm99, 1, 0
    %v112 = vsel %vm100, 1, 0
    %v113 = vsel %vm101, 1, 0
    %v114 = vsel %vm102, 1, 0
    %v115 = vcvt.s32.f32 %v103
    %v116 = vcvt.s32.f32 %v104
    %v117 = vcvt.s32.f32 %v105
    %v118 = vcvt.s32.f32 %v106
    %v119 = vcvt.s32.f32 %v107
    %v120 = vcvt.s32.f32 %v108
    %v121 = vcvt.s32.f32 %v109
    %v122 = vcvt.s32.f32 %v110
    %v123 = vcvt.s32.f32 %v111
    %v124 = vcvt.s32.f32 %v112
    %v125 = vcvt.s32.f32 %v113
    %v126 = vcvt.s32.f32 %v114
    %v127 = vld [vmem:[#allocation4] sm:$0xff]
    %v128 = vld [vmem:[#allocation4 + $0x8] sm:$0xff]
    %v129 = vld [vmem:[#allocation4 + $0x10] sm:$0xff]
    %v130 = vld [vmem:[#allocation4 + $0x18] sm:$0xff]
    %vm131 = vcmask 736256
    %v133 = vsel %vm131, %v127, 0
    %v136 = vsel %vm131, %v128, 0
    %v139 = vsel %vm131, %v129, 0
    %v142 = vsel %vm131, %v130, 0
    %vm144 = vcmask 1041408
    %v146 = vsel %vm144, %v126, 0
    %148 = vmatprep.subr.mxu0 0.0
    %149 = vmatpush1.msra.mxu0 %v115
    %150 = vmatprep.subr.mxu0 0.0
    %151 = vmatpush1.msra.mxu0 %v116
    %152 = vmatprep.subr.mxu0 0.0
    %153 = vmatpush1.msra.mxu0 %v117
    %154 = vmatprep.subr.mxu0 0.0
    %155 = vmatpush1.msra.mxu0 %v118
    %156 = vmatprep.subr.mxu0 0.0
    %157 = vmatpush1.msra.mxu0 %v119
    %158 = vmatprep.subr.mxu0 0.0
    %159 = vmatpush1.msra.mxu0 %v120
    %160 = vmatprep.subr.mxu0 0.0
    %161 = vmatpush1.msra.mxu0 %v121
    %162 = vmatprep.subr.mxu0 0.0
    %163 = vmatpush1.msra.mxu0 %v122
    %164 = vmatprep.subr.mxu0 0.0
    %165 = vmatpush1.msra.mxu0 %v123
    %166 = vmatprep.subr.mxu0 0.0
    %167 = vmatpush1.msra.mxu0 %v124
    %168 = vmatprep.subr.mxu0 0.0
    %169 = vmatpush1.msra.mxu0 %v125
    %170 = vmatprep.subr.mxu0 0.0
    %171 = vmatpush1.msra.mxu0 %v146
    %172 = vmatprep.subr.mxu0 0.0
    %173 = vmatpush1.msra.mxu0 0.0
    %174 = vmatprep.subr.mxu0 0.0
    %175 = vmatpush1.msra.mxu0 0.0
    %176 = vmatprep.subr.mxu0 0.0
    %177 = vmatpush1.msra.mxu0 0.0
    %178 = vmatprep.subr.mxu0 0.0
    %179 = vmatpush1.msra.mxu0 0.0
    %180 = vmatprep.subr.mxu0 0.0
    %181 = vmatpush1.msra.mxu0 0.0
    %182 = vmatprep.subr.mxu0 0.0
    %183 = vmatpush1.msra.mxu0 0.0
    %184 = vmatprep.subr.mxu0 0.0
    %185 = vmatpush1.msra.mxu0 0.0
    %186 = vmatprep.subr.mxu0 0.0
    %187 = vmatpush1.msra.mxu0 0.0
    %188 = vmatprep.subr.mxu0 0.0
    %189 = vmatpush1.msra.mxu0 0.0
    %190 = vmatprep.subr.mxu0 0.0
    %191 = vmatpush1.msra.mxu0 0.0
    %192 = vmatprep.subr.mxu0 0.0
    %193 = vmatpush1.msra.mxu0 0.0
    %194 = vmatprep.subr.mxu0 0.0
    %195 = vmatpush1.msra.mxu0 0.0
    %196 = vmatprep.subr.mxu0 0.0
    %197 = vmatpush1.msra.mxu0 0.0
    %198 = vmatprep.subr.mxu0 0.0
    %199 = vmatpush1.msra.mxu0 0.0
    %200 = vmatprep.subr.mxu0 0.0
    %201 = vmatpush1.msra.mxu0 0.0
    %202 = vmatprep.subr.mxu0 0.0
    %203 = vmatpush1.msra.mxu0 0.0
    %204 = vmatprep.subr.mxu0 0.0
    %205 = vmatpush1.msra.mxu0 0.0
    %206 = vmatprep.subr.mxu0 0.0
    %207 = vmatpush1.msra.mxu0 0.0
    %208 = vmatprep.subr.mxu0 0.0
    %209 = vmatpush1.msra.mxu0 0.0
    %210 = vmatprep.subr.mxu0 0.0
    %211 = vmatpush1.msra.mxu0 0.0
    %212 = vmatprep.mubr.f32.mxu0 0.0
    %213 = vmatmul.mubr.f32.gmra.mrb[0].mxu0 %v133
    %v214 = vpop.f32.mrb[0].mxu0
    %v215 = vadd.f32 0.0, %v214
    %v216 = vpop.f32.mrb[0].mxu0
    %217 = vmatprep.mubr.f32.mxu0 0.0
    %218 = vmatmul.mubr.f32.gmra.mrb[0].mxu0 %v136
    %v219 = vpop.f32.mrb[0].mxu0
    %v220 = vadd.f32 0.0, %v219
    %v221 = vpop.f32.mrb[0].mxu0
    %222 = vmatprep.mubr.f32.mxu0 0.0
    %223 = vmatmul.mubr.f32.gmra.mrb[0].mxu0 %v139
    %v224 = vpop.f32.mrb[0].mxu0
    %v225 = vadd.f32 0.0, %v224
    %v226 = vpop.f32.mrb[0].mxu0
    %227 = vmatprep.mubr.f32.mxu0 0.0
    %228 = vmatmul.mubr.f32.gmra.mrb[0].mxu0 %v142
    %v229 = vpop.f32.mrb[0].mxu0
    %v230 = vadd.f32 0.0, %v229
    %v231 = vpop.f32.mrb[0].mxu0
    %232 = vdwg.mxu0
    %vm233 = vcmp.eq.s32.totalorder %v46, 31
    %vm234 = vcmp.eq.s32.totalorder %v47, 31
    %vm235 = vcmp.eq.s32.totalorder %v48, 31
    %vm236 = vcmp.eq.s32.totalorder %v49, 31
    %v237 = vld [vmem:[%s2] sm:$0x1]
    %v239 = vlaneseq
    %v240 = vshrl.u32 %v239, 7
    %v241 = vsub.s32 0, %v240
    %v242 = vrot.slane %v237, %v241
    %v244 = vsel %vm233, %v242, %v215
    %v245 = vsel %vm234, %v242, %v220
    %v246 = vsel %vm235, %v242, %v225
    %v247 = vsel %vm236, %v242, %v230
    %vm248 = vcmask 130048
    %249 = vst.msk [vmem:[%s4] sm:$0xff] %vm248, %v244
    %250 = vst.msk [vmem:[%s4 + $0x8] sm:$0xff] %vm248, %v245
    %251 = vst.msk [vmem:[%s4 + $0x10] sm:$0xff] %vm248, %v246
    %252 = vst.msk [vmem:[%s4 + $0x18] sm:$0xff] %vm248, %v247
    // Predicated region
    $region26: #{tpu_custom_call.1} parent=1 // pred_check
      _
    $region27: #{tpu_custom_call.1} parent=1 // pred_check_branch
      %254 = sbr.rel (0) target = $region29
    $region28: #{tpu_custom_call.1} parent=1 // pred_region
      _
    $region29: #{tpu_custom_call.1} parent=1 // pred_fallthru
      _
    // Predicated region
    $region30: #{tpu_custom_call.1} parent=1 // pred_check
      _
    $region31: #{tpu_custom_call.1} parent=1 // pred_check_branch
      %256 = sbr.rel (0) target = $region33
    $region32: #{tpu_custom_call.1} parent=1 // pred_region
      _
    $region33: #{tpu_custom_call.1} parent=1 // pred_fallthru
      _
    %257 = vsyncpa [#allocation3], 1
    %258 = vsyncpa [#allocation5], 1

</llo_original>
